<compile_context>
chip_gen: v5e
topology: v5e:2x2
jax: 0.10.0
libtpu: 0.0.40
codegen_flags: <defaults>
</compile_context>

<pallas_src>
import math

import jax
import jax.numpy as jnp
from jax.experimental import pallas as pl
from jax.experimental.pallas import tpu as pltpu

SQRT2 = math.sqrt(2.0)

_LANE = 128
_SUBLANE = 8


def _round_up(n: int, m: int) -> int:
    return pl.cdiv(n, m) * m


# ---------------------------------------------------------------------------
# Deterministic buffer construction (no checkpoint load; same math as __init__)
# ---------------------------------------------------------------------------
def make_mp_fourier_buffers(num_channels: int, bandwidth: float = 1.0, eps: float = 1e-3):
    lin = jnp.linspace(0.0, 1.0 - eps, num_channels, dtype=jnp.float32)
    freqs = jnp.pi * jax.scipy.special.erfinv(lin) * bandwidth
    phases = (jnp.pi / 2.0) * ((jnp.arange(num_channels) % 2) == 0).astype(jnp.float32)
    return freqs.astype(jnp.float32), phases.astype(jnp.float32)


# ---------------------------------------------------------------------------
# Device-aware VMEM plan: (per-buffer tile budget bytes, vmem_limit_bytes|None)
# ---------------------------------------------------------------------------
def _vmem_plan():
    kind = ""
    try:
        kind = (getattr(jax.devices()[0], "device_kind", "") or "").lower()
    except Exception:
        pass
    if ("v5 lite" in kind) or ("v5e" in kind) or ("v5lite" in kind):
        # 16 MiB scoped default: 4 x 2 MiB live buffers fits with headroom.
        return 2 * 1024 * 1024, None
    if "v6" in kind:
        # 32 MiB scoped default / 128 MiB physical: 4 x 6 MiB + explicit limit.
        return 6 * 1024 * 1024, 40 * 1024 * 1024
    if "v7" in kind:
        # 32 MiB scoped default / 64 MiB physical per TC: stay well under 48 MiB.
        return 6 * 1024 * 1024, 44 * 1024 * 1024
    # Unknown chip (v4, v5p, interpret, ...): conservative.
    return 2 * 1024 * 1024, None


def _native_sublane(itemsize: int) -> int:
    # 8 rows/f32, 16 rows/bf16, 32 rows/int8 per packed vreg tile.
    return max(_SUBLANE, (_SUBLANE * 4) // max(itemsize, 1))


def _largest_even_lane_divisor(cols: int, cap: int):
    """Largest multiple of 128 that divides `cols` and is <= cap, else None."""
    d = (min(cap, cols) // _LANE) * _LANE
    while d >= _LANE:
        if cols % d == 0:
            return d
        d -= _LANE
    return None


# ---------------------------------------------------------------------------
# Tile sizing: lane tile (multiple of 128, even divisor preferred, or full
# dim), row tile (multiple of dtype-native sublane packing, or full dim),
# within the per-buffer byte budget.
# ---------------------------------------------------------------------------
def _choose_tiles(rows: int, cols: int, itemsize: int, tile_bytes: int):
    itemsize = max(itemsize, 1)
    sub = _native_sublane(itemsize)

    # Lane (last-dim) tile.
    lane_cap = max(_LANE, tile_bytes // (sub * itemsize))
    if cols <= lane_cap:
        t_c = cols                                 # full-dim exemption from the 128 rule
    else:
        t_c = _largest_even_lane_divisor(cols, lane_cap)
        if t_c is None:                            # no even divisor: masked ragged edge
            t_c = min((lane_cap // _LANE) * _LANE, 4096)

    # Sublane (row) tile.
    budget_rows = max(tile_bytes // (t_c * itemsize), sub)
    if rows <= budget_rows:
        t_r = rows                                 # full-dim exemption from the 8 rule
    else:
        t_r = max((budget_rows // sub) * sub, sub)
        # Prefer an even divisor of rows (avoid a masked tail stripe) if it
        # doesn't shrink the tile by more than 2x.
        d = t_r
        floor_d = max(sub, t_r // 2)
        while d >= floor_d:
            if rows % d == 0:
                t_r = d
                break
            d -= sub
    return t_r, t_c, sub


def _maybe_split_for_megacore(t_r: int, t_c: int, rows: int, cols: int, sub: int):
    """If the grid would be a single block, split so both v7x TCs get work."""
    if pl.cdiv(rows, t_r) * pl.cdiv(cols, t_c) >= 2:
        return t_r, t_c
    if cols >= 2 * _LANE:                          # prefer splitting the lane axis
        d = _largest_even_lane_divisor(cols, cols // 2)
        if d is None:
            d = _round_up(pl.cdiv(cols, 2), _LANE)
        return t_r, d
    if rows >= 2 * sub:
        return _round_up(pl.cdiv(rows, 2), sub), t_c
    return t_r, t_c                                # tiny problem: leave as one block


def _compiler_params(dim_sem, vmem_limit):
    kwargs = dict(dimension_semantics=dim_sem)
    if vmem_limit is not None:
        kwargs["vmem_limit_bytes"] = vmem_limit
    return pltpu.CompilerParams(**kwargs)


# ---------------------------------------------------------------------------
# Kernel 1: 4-D NCHW input, collapsed to rows = N*C, cols = H*W.
#   y[r, s] = cos(x[r, s] * f[r] + p[r]) * sqrt(2)
# ---------------------------------------------------------------------------
def _fourier_rows_kernel(x_ref, f_ref, p_ref, o_ref):
    # x_ref: (t_r, t_hw) x.dtype; f_ref/p_ref: (t_r, 1) f32; o_ref: x.dtype
    x = x_ref[...].astype(jnp.float32)             # in-kernel upcast (one HBM read)
    y = x * f_ref[...] + p_ref[...]                # per-row scale + phase (VPU)
    o_ref[...] = (jnp.cos(y) * SQRT2).astype(o_ref.dtype)


def mp_fourier_nchw(x, freqs, phases):
    # Layout stays NCHW; (N, C) collapse onto sublanes and (H, W) flatten onto
    # lanes are both free, contiguous reshapes (no transpose).
    N, C, H, W = x.shape
    HW = H * W
    R = N * C

    x2 = x.reshape(R, HW)                          # native dtype; cast in-kernel
    f2 = jnp.tile(freqs.astype(jnp.float32), N).reshape(R, 1)
    p2 = jnp.tile(phases.astype(jnp.float32), N).reshape(R, 1)

    itemsize = jnp.dtype(x.dtype).itemsize
    tile_bytes, vmem_limit = _vmem_plan()
    t_r, t_hw, sub = _choose_tiles(R, HW, itemsize, tile_bytes)
    t_r, t_hw = _maybe_split_for_megacore(t_r, t_hw, R, HW, sub)

    # Keep HW as the LAST (fastest-varying) grid axis so the (t_r, 1)
    # freq/phase blocks keep a constant block index across the inner loop.
    grid = (pl.cdiv(R, t_r), pl.cdiv(HW, t_hw))

    io_bytes = 2 * R * HW * itemsize + 2 * R * 4
    cost = pl.CostEstimate(flops=3 * R * HW, transcendentals=R * HW,
                           bytes_accessed=io_bytes)

    out = pl.pallas_call(
        _fourier_rows_kernel,
        out_shape=jax.ShapeDtypeStruct((R, HW), x.dtype),
        grid=grid,
        in_specs=[
            pl.BlockSpec((t_r, t_hw), lambda r, h: (r, h)),
            pl.BlockSpec((t_r, 1), lambda r, h: (r, 0)),
            pl.BlockSpec((t_r, 1), lambda r, h: (r, 0)),
        ],
        out_specs=pl.BlockSpec((t_r, t_hw), lambda r, h: (r, h)),
        compiler_params=_compiler_params(("parallel", "parallel"), vmem_limit),
        cost_estimate=cost,
    )(x2, f2, p2)
    return out.reshape(N, C, H, W)


# ---------------------------------------------------------------------------
# Kernel 2: 1-D input (timestep-embedding path)
#   y[n, c] = cos(x[n] * f[c] + p[c]) * sqrt(2)
# C is padded up to a multiple of 128 so every store is a full, unmasked vst;
# the pad columns are sliced off in the wrapper.  Tiny problems fall back to
# plain XLA where pallas_call fixed overhead would dominate.
# ---------------------------------------------------------------------------
def _fourier_outer_kernel(x_ref, f_ref, p_ref, o_ref):
    # x_ref: (t_n, 1) x.dtype; f_ref/p_ref: (1, C_pad) f32; o_ref: (t_n, C_pad)
    x = x_ref[...].astype(jnp.float32)
    y = x * f_ref[...] + p_ref[...]                # outer product via broadcast
    o_ref[...] = (jnp.cos(y) * SQRT2).astype(o_ref.dtype)


_MIN_PALLAS_ELEMS_1D = 4096                        # below this, XLA fallback wins


def mp_fourier_1d(x, freqs, phases):
    N = x.shape[0]
    C = freqs.shape[0]
    C_pad = max(_LANE, _round_up(C, _LANE))

    if N * C_pad < _MIN_PALLAS_ELEMS_1D:
        # Tiny time-embedding call: plain XLA is cheaper than kernel launch.
        y = (x.astype(jnp.float32)[:, None] * freqs.astype(jnp.float32)[None, :]
             + phases.astype(jnp.float32)[None, :])
        return (jnp.cos(y) * SQRT2).astype(x.dtype)

    fpad = jnp.zeros((1, C_pad), jnp.float32).at[0, :C].set(freqs.astype(jnp.float32))
    ppad = jnp.zeros((1, C_pad), jnp.float32).at[0, :C].set(phases.astype(jnp.float32))
    x2 = x.reshape(N, 1)                           # native dtype; cast in-kernel

    itemsize = jnp.dtype(x.dtype).itemsize
    tile_bytes, vmem_limit = _vmem_plan()
    sub = _native_sublane(itemsize)
    if N <= sub:
        t_n = N
    else:
        budget_rows = max(tile_bytes // (C_pad * max(itemsize, 1)), sub)
        t_n = N if budget_rows >= N else max((budget_rows // sub) * sub, sub)
    grid = (pl.cdiv(N, t_n),)

    cost = pl.CostEstimate(flops=3 * N * C_pad, transcendentals=N * C_pad,
                           bytes_accessed=N * itemsize + N * C_pad * itemsize + 8 * C_pad)

    out = pl.pallas_call(
        _fourier_outer_kernel,
        out_shape=jax.ShapeDtypeStruct((N, C_pad), x.dtype),
        grid=grid,
        in_specs=[
            pl.BlockSpec((t_n, 1), lambda i: (i, 0)),
            pl.BlockSpec((1, C_pad), lambda i: (0, 0)),
            pl.BlockSpec((1, C_pad), lambda i: (0, 0)),
        ],
        out_specs=pl.BlockSpec((t_n, C_pad), lambda i: (i, 0)),
        compiler_params=_compiler_params(("parallel",), vmem_limit),
        cost_estimate=cost,
    )(x2, fpad, ppad)
    return out[:, :C]


# ---------------------------------------------------------------------------
if __name__ == "__main__":
    key = jax.random.PRNGKey(0)
    k4, k1a, k1b = jax.random.split(key, 3)

    # ---- 4-D path: x of shape (2, 4, 16, 16), num_channels = 4 ----
    C4 = 4
    freqs4, phases4 = make_mp_fourier_buffers(C4)
    x4 = jax.random.normal(k4, (2, C4, 16, 16), dtype=jnp.float32)
    y4 = mp_fourier_nchw(x4, freqs4, phases4)
    jax.block_until_ready(y4)

    ref4 = (jnp.cos(x4 * freqs4.reshape(1, C4, 1, 1) + phases4.reshape(1, C4, 1, 1))
            * SQRT2).astype(x4.dtype)
    assert y4.shape == (2, C4, 16, 16) and y4.dtype == x4.dtype
    assert jnp.allclose(y4, ref4, atol=1e-4, rtol=1e-4)

    # ---- 4-D path, bf16 input (in-kernel upcast, dtype-native sublane tile) ----
    x4b = x4.astype(jnp.bfloat16)
    y4b = mp_fourier_nchw(x4b, freqs4, phases4)
    jax.block_until_ready(y4b)
    ref4b = (jnp.cos(x4b.astype(jnp.float32) * freqs4.reshape(1, C4, 1, 1)
                     + phases4.reshape(1, C4, 1, 1)) * SQRT2).astype(jnp.bfloat16)
    assert y4b.dtype == jnp.bfloat16
    assert jnp.allclose(y4b.astype(jnp.float32), ref4b.astype(jnp.float32),
                        atol=2e-2, rtol=2e-2)

    # ---- 1-D path, tiny (8, 32): XLA fallback (pallas overhead would dominate) ----
    C1 = 32
    freqs1, phases1 = make_mp_fourier_buffers(C1)
    x1 = jax.random.normal(k1a, (8,), dtype=jnp.float32)
    y1 = mp_fourier_1d(x1, freqs1, phases1)
    jax.block_until_ready(y1)
    ref1 = (jnp.cos(x1[:, None] * freqs1[None, :] + phases1[None, :]) * SQRT2).astype(x1.dtype)
    assert y1.shape == (8, C1) and y1.dtype == x1.dtype
    assert jnp.allclose(y1, ref1, atol=1e-4, rtol=1e-4)

    # ---- 1-D path, Pallas (256, 192): exercises lane-padding to 256 + slice ----
    C2 = 192
    freqs2, phases2 = make_mp_fourier_buffers(C2)
    x2 = jax.random.normal(k1b, (256,), dtype=jnp.float32)
    y2 = mp_fourier_1d(x2, freqs2, phases2)
    jax.block_until_ready(y2)
    ref2 = (jnp.cos(x2[:, None] * freqs2[None, :] + phases2[None, :]) * SQRT2).astype(x2.dtype)
    assert y2.shape == (256, C2) and y2.dtype == x2.dtype
    assert jnp.allclose(y2, ref2, atol=1e-4, rtol=1e-4)

    print("KERNEL_OK")
</pallas_src>

<mosaic_0001>
module attributes {stable_mosaic.version = 11 : i64} {
  func.func @_fourier_rows_kernel(%arg0: i32, %arg1: i32, %arg2: memref<8x128xf32, #tpu.memory_space<vmem>>, %arg3: memref<8x1xf32, #tpu.memory_space<vmem>>, %arg4: memref<8x1xf32, #tpu.memory_space<vmem>>, %arg5: memref<8x128xf32, #tpu.memory_space<vmem>>) attributes {dimension_semantics = [#tpu.dimension_semantics<parallel>, #tpu.dimension_semantics<parallel>], iteration_bounds = array<i64: 1, 2>, scalar_prefetch = 0 : i64, scratch_operands = 0 : i64, tpu.core_type = #tpu.core_type<tc>, window_params = [{transform_indices = @transform_0, window_bounds = array<i64: 8, 128>}, {transform_indices = @transform_1, window_bounds = array<i64: 8, 1>}, {transform_indices = @transform_2, window_bounds = array<i64: 8, 1>}, {transform_indices = @transform_3, window_bounds = array<i64: 8, 128>}]} {
    %c0 = arith.constant 0 : index
    %c0_0 = arith.constant 0 : index
    %0 = vector.load %arg2[%c0, %c0_0] : memref<8x128xf32, #tpu.memory_space<vmem>>, vector<8x128xf32>
    %c0_1 = arith.constant 0 : index
    %c0_2 = arith.constant 0 : index
    %1 = vector.load %arg3[%c0_1, %c0_2] : memref<8x1xf32, #tpu.memory_space<vmem>>, vector<8x1xf32>
    %2 = vector.broadcast %1 : vector<8x1xf32> to vector<8x128xf32>
    %3 = arith.mulf %0, %2 : vector<8x128xf32>
    %c0_3 = arith.constant 0 : index
    %c0_4 = arith.constant 0 : index
    %4 = vector.load %arg4[%c0_3, %c0_4] : memref<8x1xf32, #tpu.memory_space<vmem>>, vector<8x1xf32>
    %5 = vector.broadcast %4 : vector<8x1xf32> to vector<8x128xf32>
    %6 = arith.addf %3, %5 : vector<8x128xf32>
    %7 = math.cos %6 : vector<8x128xf32>
    %cst = arith.constant 1.41421354 : f32
    %8 = vector.broadcast %cst : f32 to vector<8x128xf32>
    %9 = arith.mulf %7, %8 : vector<8x128xf32>
    %c0_5 = arith.constant 0 : index
    %c0_6 = arith.constant 0 : index
    %10 = vector.load %arg5[%c0_5, %c0_6] : memref<8x128xf32, #tpu.memory_space<vmem>>, vector<8x128xf32>
    tpu.vector_store %arg5[%c0_5, %c0_6], %9 {strides = array<i32>} : memref<8x128xf32, #tpu.memory_space<vmem>>, vector<8x128xf32>,
    return
  }
  func.func @transform_0(%arg0: i32, %arg1: i32) -> (i32, i32) {
    %c0_i32 = arith.constant 0 : i32
    return %arg0, %arg1 : i32, i32
  }
  func.func @transform_1(%arg0: i32, %arg1: i32) -> (i32, i32) {
    %c0_i32 = arith.constant 0 : i32
    %c0_i32_0 = arith.constant 0 : i32
    return %arg0, %c0_i32 : i32, i32
  }
  func.func @transform_2(%arg0: i32, %arg1: i32) -> (i32, i32) {
    %c0_i32 = arith.constant 0 : i32
    %c0_i32_0 = arith.constant 0 : i32
    return %arg0, %c0_i32 : i32, i32
  }
  func.func @transform_3(%arg0: i32, %arg1: i32) -> (i32, i32) {
    %c0_i32 = arith.constant 0 : i32
    return %arg0, %arg1 : i32, i32
  }
}

</mosaic_0001>

<llo_original>
// kernel: tpu_custom_call.1
$region0: #{tpu_custom_call.1}
  #allocation0 [shape = 'u32[]', space=smem, size = 0x4, offset = 0x4, fixed_abs, tag = 'smem constant byte address 0x4 - core index']
  #allocation1 [shape = 'u32[72,128]{1,0:T(1,128)}', space=vmem, size = 0x9000, scoped, tag = 'internal scratch']
  %s0 = inlined_call_operand.vmem [shape: f32[8,256], index: 0, kind: input, shape index: {}]
  %s1 = inlined_call_operand.vmem [shape: f32[8,1], index: 1, kind: input, shape index: {}]
  %s2 = inlined_call_operand.vmem [shape: f32[8,1], index: 2, kind: input, shape index: {}]
  %s3 = inlined_call_operand.hbm [shape: f32[8,256], index: 3, kind: output, shape index: {}]
  %s4 = sld [smem:[#allocation0]]
  $region45: #{tpu_custom_call.1} parent=0
    _
  %s6 = ssub.s32 1, %s4
  %s7 = scalar_select 0, %s6, %s4
  $region1: #{tpu_custom_call.1} parent=0
    #allocation2 [shape = 'u8[8192]{0}', space=vmem, size = 0x2000, scoped, tag = 'output window, operand 0']
    #allocation3 [shape = 's32[2]{0}', space=sflag, size = 0x8, scoped, tag = 'scoped memory for tpu_custom_call.1']
    %8 = vsyncpa [#allocation3], 0
    %s9 = scalar_lea.sflag [#allocation3], 1
    %10 = vsyncpa %s9, 0
    loop: start=0, step=1, limit=4
    $region2: #{tpu_custom_call.1} parent=1 // loop_pre_header
      _
    $region3: #{tpu_custom_call.1} parent=1 // loop_header
      %s12 = sphi 0, %s16
      %p13 = scmp.ge.s32.totalorder %s12, 4
      %s19 = sphi 0, %s31
      %s20 = sphi 0, %s27
      %s21 = sphi 0, %s19
      %s22 = sphi 0, %s20
      %s23 = sphi 0, %s21
      %s24 = sphi 0, %s22
      %s36 = sphi 0, %s38
      %s39 = sphi 0, %s36
      %s40 = sphi 0, %s39
      %s56 = sphi 0, %s40
      %s62 = sphi 0, %s64
      %s65 = sphi 0, %s62
      %s66 = sphi 0, %s65
      %s82 = sphi 0, %s66
      %s88 = sphi 0, %s90
      %s91 = sphi 0, %s88
      %s92 = sphi 0, %s91
      %s108 = sphi 0, %s92
      %s116 = sphi 0, %s118
      %s119 = sphi 0, %s116
      %s120 = sphi 0, %s119
      %s136 = sphi 0, %s120
    $region4: #{tpu_custom_call.1} parent=1 // loop_header_branch
      %15 = sbr.rel (%p13) target = $region8
    $region5: #{tpu_custom_call.1} parent=1 // loop_body
      %s17 = ssub.s32 %s12, 1
      %s18 = ssub.s32 %s12, 2
      %s25 = sadd.s32 1, %s20
      %p26 = scmp.ge.s32.totalorder %s25, 2
      %s27 = scalar_select %p26, 0, %s25
      %s28 = sadd.s32 1, %s19
      %s29 = scalar_select %p26, %s28, %s19
      %p30 = scmp.ge.s32.totalorder %s29, 1
      %s31 = scalar_select %p30, 0, %s29
      %s32 = ssub.s32 %s19, %s31
      %s33 = ssub.s32 %s20, %s27
      %s34 = sor.u32 %s32, %s33
      %p35 = scmp.eq.s32.totalorder %s34, 0
      %s37 = sadd.s32 %s36, 1
      %s38 = scalar_select %p35, %s36, %s37
      %p41 = pneg %p35
      %p42 = scmp.eq.s32.totalorder %s12, 1
      %p43 = por %p41, %p42
      %p44 = scmp.ne.s32.totalorder %s36, %s39
      %p45 = scmp.eq.s32.totalorder %s12, 0
      %p46 = por %p44, %p45
      %p47 = scmp.ne.s32.totalorder %s36, %s39
      %p48 = scmp.eq.s32.totalorder %s17, 1
      %p49 = por %p47, %p48
      %p50 = scmp.ne.s32.totalorder %s39, %s40
      %p51 = scmp.eq.s32.totalorder %s17, 0
      %p52 = por %p50, %p51
      %p53 = scmp.ne.s32.totalorder %s39, %s40
      %p54 = scmp.eq.s32.totalorder %s18, 1
      %p55 = por %p53, %p54
      %p57 = scmp.ne.s32.totalorder %s40, %s56
      %p58 = scmp.eq.s32.totalorder %s18, 0
      %p59 = por %p57, %p58
      %s60 = ssub.s32 %s19, %s31
      %p61 = scmp.eq.s32.totalorder %s60, 0
      %s63 = sadd.s32 %s62, 1
      %s64 = scalar_select %p61, %s62, %s63
      %p67 = pneg %p61
      %p68 = scmp.eq.s32.totalorder %s12, 1
      %p69 = por %p67, %p68
      %p70 = scmp.ne.s32.totalorder %s62, %s65
      %p71 = scmp.eq.s32.totalorder %s12, 0
      %p72 = por %p70, %p71
      %p73 = scmp.ne.s32.totalorder %s62, %s65
      %p74 = scmp.eq.s32.totalorder %s17, 1
      %p75 = por %p73, %p74
      %p76 = scmp.ne.s32.totalorder %s65, %s66
      %p77 = scmp.eq.s32.totalorder %s17, 0
      %p78 = por %p76, %p77
      %p79 = scmp.ne.s32.totalorder %s65, %s66
      %p80 = scmp.eq.s32.totalorder %s18, 1
      %p81 = por %p79, %p80
      %p83 = scmp.ne.s32.totalorder %s66, %s82
      %p84 = scmp.eq.s32.totalorder %s18, 0
      %p85 = por %p83, %p84
      %s86 = ssub.s32 %s19, %s31
      %p87 = scmp.eq.s32.totalorder %s86, 0
      %s89 = sadd.s32 %s88, 1
      %s90 = scalar_select %p87, %s88, %s89
      %p93 = pneg %p87
      %p94 = scmp.eq.s32.totalorder %s12, 1
      %p95 = por %p93, %p94
      %p96 = scmp.ne.s32.totalorder %s88, %s91
      %p97 = scmp.eq.s32.totalorder %s12, 0
      %p98 = por %p96, %p97
      %p99 = scmp.ne.s32.totalorder %s88, %s91
      %p100 = scmp.eq.s32.totalorder %s17, 1
      %p101 = por %p99, %p100
      %p102 = scmp.ne.s32.totalorder %s91, %s92
      %p103 = scmp.eq.s32.totalorder %s17, 0
      %p104 = por %p102, %p103
      %p105 = scmp.ne.s32.totalorder %s91, %s92
      %p106 = scmp.eq.s32.totalorder %s18, 1
      %p107 = por %p105, %p106
      %p109 = scmp.ne.s32.totalorder %s92, %s108
      %p110 = scmp.eq.s32.totalorder %s18, 0
      %p111 = por %p109, %p110
      %s112 = ssub.s32 %s19, %s31
      %s113 = ssub.s32 %s20, %s27
      %s114 = sor.u32 %s112, %s113
      %p115 = scmp.eq.s32.totalorder %s114, 0
      %s117 = sadd.s32 %s116, 1
      %s118 = scalar_select %p115, %s116, %s117
      %p121 = pneg %p115
      %p122 = scmp.eq.s32.totalorder %s12, 1
      %p123 = por %p121, %p122
      %p124 = scmp.ne.s32.totalorder %s116, %s119
      %p125 = scmp.eq.s32.totalorder %s12, 0
      %p126 = por %p124, %p125
      %p127 = scmp.ne.s32.totalorder %s116, %s119
      %p128 = scmp.eq.s32.totalorder %s17, 1
      %p129 = por %p127, %p128
      %p130 = scmp.ne.s32.totalorder %s119, %s120
      %p131 = scmp.eq.s32.totalorder %s17, 0
      %p132 = por %p130, %p131
      %p133 = scmp.ne.s32.totalorder %s119, %s120
      %p134 = scmp.eq.s32.totalorder %s18, 1
      %p135 = por %p133, %p134
      %p137 = scmp.ne.s32.totalorder %s120, %s136
      %p138 = scmp.eq.s32.totalorder %s18, 0
      %p139 = por %p137, %p138
      %p140 = scmp.le.s32.totalorder 1, %s12
      %p141 = scmp.lt.s32.totalorder %s12, 3
      %p142 = pnand %p140, %p141
      %p143 = pneg %p142
      // Predicated region
      $region9: #{tpu_custom_call.1} parent=5 // pred_check
        _
      $region10: #{tpu_custom_call.1} parent=5 // pred_check_branch
        %145 = sbr.rel (%p142) target = $region12
      $region11: #{tpu_custom_call.1} parent=5 // pred_region
        %s146 = ssub.s32 %s12, 1
        // Predicated region
        $region13: #{tpu_custom_call.1} parent=11 // pred_check
          %p147 = pneg %p78
        $region14: #{tpu_custom_call.1} parent=11 // pred_check_branch
          %149 = sbr.rel (%p147) target = $region16
        $region15: #{tpu_custom_call.1} parent=11 // pred_region
          %p150 = scmp.lt.s32.totalorder %s21, 0
          %s151 = scalar_select %p150, %s21, 0
          %s152 = smul.addr %s151, 8
          %s153 = scalar_lea.vmem %s1, %s152
        $region16: #{tpu_custom_call.1} parent=11 // pred_fallthru
          _
        // Predicated region
        $region17: #{tpu_custom_call.1} parent=11 // pred_check
          %p154 = pneg %p104
        $region18: #{tpu_custom_call.1} parent=11 // pred_check_branch
          %156 = sbr.rel (%p154) target = $region20
        $region19: #{tpu_custom_call.1} parent=11 // pred_region
          %p157 = scmp.lt.s32.totalorder %s21, 0
          %s158 = scalar_select %p157, %s21, 0
          %s159 = smul.addr %s158, 8
          %s160 = scalar_lea.vmem %s2, %s159
        $region20: #{tpu_custom_call.1} parent=11 // pred_fallthru
          _
      $region12: #{tpu_custom_call.1} parent=5 // pred_fallthru
        _
      %p161 = scmp.lt.s32.totalorder %s12, 2
      // Predicated region
      $region21: #{tpu_custom_call.1} parent=5 // pred_check
        %p162 = pneg %p161
      $region22: #{tpu_custom_call.1} parent=5 // pred_check_branch
        %164 = sbr.rel (%p162) target = $region24
      $region23: #{tpu_custom_call.1} parent=5 // pred_region
        // Predicated region
        $region25: #{tpu_custom_call.1} parent=23 // pred_check
          %p165 = pneg %p46
        $region26: #{tpu_custom_call.1} parent=23 // pred_check_branch
          %167 = sbr.rel (%p165) target = $region28
        $region27: #{tpu_custom_call.1} parent=23 // pred_region
          %p168 = scmp.lt.s32.totalorder %s19, 0
          %s169 = scalar_select %p168, %s19, 0
          %p170 = scmp.lt.s32.totalorder %s20, 1
          %s171 = scalar_select %p170, %s20, 1
          %s172 = smul.addr %s169, 2
          %s173 = sadd.s32 %s171, %s172
          %s174 = smul.addr %s173, 8
          %s175 = scalar_lea.vmem %s0, %s174
        $region28: #{tpu_custom_call.1} parent=23 // pred_fallthru
          _
      $region24: #{tpu_custom_call.1} parent=5 // pred_fallthru
        _
      %p176 = scmp.le.s32.totalorder 1, %s12
      %p177 = scmp.lt.s32.totalorder %s12, 3
      %p178 = pnand %p176, %p177
      %p179 = pneg %p178
      // Predicated region
      $region29: #{tpu_custom_call.1} parent=5 // pred_check
        _
      $region30: #{tpu_custom_call.1} parent=5 // pred_check_branch
        %181 = sbr.rel (%p178) target = $region32
      $region31: #{tpu_custom_call.1} parent=5 // pred_region
        %s182 = ssub.s32 %s12, 1
        %p183 = scmp.lt.s32.totalorder %s21, 0
        %s184 = scalar_select %p183, %s21, 0
        %p185 = scmp.lt.s32.totalorder %s22, 1
        %s186 = scalar_select %p185, %s22, 1
        %s187 = smul.addr %s184, 2
        %s188 = sadd.s32 %s186, %s187
        %s189 = smul.addr %s188, 8
        %s190 = scalar_lea.vmem %s0, %s189
        %p191 = pneg %p52
        %p192 = pneg %p49
        %p193 = scmp.lt.s32.totalorder %s21, 0
        %s194 = scalar_select %p193, %s21, 0
        %s195 = smul.addr %s194, 8
        %s196 = scalar_lea.vmem %s1, %s195
        %p197 = pneg %p78
        %p198 = pneg %p75
        %p199 = scmp.lt.s32.totalorder %s21, 0
        %s200 = scalar_select %p199, %s21, 0
        %s201 = smul.addr %s200, 8
        %s202 = scalar_lea.vmem %s2, %s201
        %p203 = pneg %p104
        %p204 = pneg %p101
        %p205 = pneg %p132
        %p206 = pneg %p129
        %s207 = sand.u32 %s119, 1
        %s208 = scalar_lea.sflag [#allocation3], %s207
        %s209 = sand.u32 %s119, 1
        %s210 = smul.addr %s209, 8
        %s211 = scalar_lea.vmem [#allocation2], %s210
        %p212 = scmp.lt.s32.totalorder %s21, 0
        %s213 = scalar_select %p212, %s21, 0
        %p214 = scmp.lt.s32.totalorder %s22, 1
        %s215 = scalar_select %p214, %s22, 1
        %s216 = smul.addr %s213, 2
        %s217 = sadd.s32 %s215, %s216
        %s218 = smul.addr %s217, 8
        %s219 = scalar_lea.vmem %s0, %s218
        %p220 = scmp.lt.s32.totalorder %s21, 0
        %s221 = scalar_select %p220, %s21, 0
        %s222 = smul.addr %s221, 8
        %s223 = scalar_lea.vmem %s1, %s222
        %p224 = scmp.lt.s32.totalorder %s21, 0
        %s225 = scalar_select %p224, %s21, 0
        %s226 = smul.addr %s225, 8
        %s227 = scalar_lea.vmem %s2, %s226
        %v228 = vld [vmem:[%s219] sm:$0xff]
        %v229 = vld [vmem:[%s223] sm:$0xff]
        %231 = vset.pattern.permute.xlu0 0
        %232 = vperm.xlu0 %231, %v229
        %v233 = vpop.permute.xlu0 %232
        %v235 = vmul.f32 %v228, %v233
        %v236 = vld [vmem:[%s227] sm:$0xff]
        %238 = vset.pattern.permute.xlu0 0
        %239 = vperm.xlu0 %238, %v236
        %v240 = vpop.permute.xlu0 %239
        %v242 = vadd.f32 %v235, %v240
        %v243 = vand.u32 2147483647, %v242
        %vm244 = vcmp.le.f32.partialorder %v243, 0.7853982
        %vm245 = vcmp.lt.s32.totalorder %v242, 0
        %v246 = vand.u32 %v242, 2139095040
        %v247 = vshrl.u32 %v246, 23
        %v248 = vsub.s32 %v247, 127
        %v249 = vand.u32 2147483647, %v242
        %v250 = vand.u32 %v249, 8388607
        %v251 = vor.u32 %v250, 8388608
        %v252 = vsub.s32 0, %v251
        %v253 = vadd.s32 %v248, 1
        %vm254 = vcmp.gt.s32.totalorder %v253, 0
        %v255 = vsel %vm254, %v253, 0
        %v256 = vshrl.u32 %v255, 5
        %v257 = vand.u32 %v255, 31
        %v258 = vsub.s32 32, %v257
        %v259 = vshrl.u32 683565275, %v258
        %v260 = vshll.u32 683565275, %v257
        %v261 = vshrl.u32 2475754826, %v258
        %v262 = vor.u32 %v260, %v261
        %v263 = vshll.u32 2475754826, %v257
        %v264 = vshrl.u32 2131351028, %v258
        %v265 = vor.u32 %v263, %v264
        %v266 = vshll.u32 2131351028, %v257
        %v267 = vshrl.u32 2102212464, %v258
        %v268 = vor.u32 %v266, %v267
        %v269 = vshll.u32 2102212464, %v257
        %v270 = vshrl.u32 920167782, %v258
        %v271 = vor.u32 %v269, %v270
        %v272 = vshll.u32 920167782, %v257
        %v273 = vshrl.u32 1326507024, %v258
        %v274 = vor.u32 %v272, %v273
        %vm275 = vcmp.lt.s32.totalorder %v256, 1
        %vm276 = vcmp.lt.s32.totalorder %v256, 2
        %vm277 = vcmp.lt.s32.totalorder %v256, 3
        %vm278 = vcmp.lt.s32.totalorder %v256, 4
        %v279 = vsel %vm275, %v259, %v262
        %v280 = vsel %vm278, %v268, 2102212464
        %v281 = vsel %vm277, %v265, %v280
        %v282 = vsel %vm276, %v279, %v281
        %v283 = vsel %vm275, %v262, %v265
        %v284 = vsel %vm278, %v271, 920167782
        %v285 = vsel %vm277, %v268, %v284
        %v286 = vsel %vm276, %v283, %v285
        %v287 = vsel %vm275, %v265, %v268
        %v288 = vsel %vm278, %v274, 1326507024
        %v289 = vsel %vm277, %v271, %v288
        %v290 = vsel %vm276, %v287, %v289
        %v291 = vshll.u32 %v251, 8
        %v292 = vand.u32 %v291, 65535
        %v293 = vshrl.u32 %v291, 16
        %v294 = vand.u32 %v290, 65535
        %v295 = vshrl.u32 %v290, 16
        %v296 = vmul.u32 %v292, %v294
        %v297 = vmul.u32 %v292, %v295
        %v298 = vmul.u32 %v293, %v294
        %v299 = vmul.u32 %v293, %v295
        %v300 = vshll.u32 %v297, 16
        %v301 = vshrl.u32 %v297, 16
        %v302 = vshll.u32 %v298, 16
        %v303 = vshrl.u32 %v298, 16
        %vm304 = vc.u32 %v296, %v300
        %v305 = vsel %vm304, 1, 0
        %v306 = vadd.s32 %v296, %v300
        %v307 = vadd.s32 %v299, %v305
        %vm308 = vc.u32 %v306, %v302
        %v309 = vsel %vm308, 1, 0
        %v310 = vadd.s32 %v306, %v302
        %v311 = vadd.s32 %v307, %v309
        %v312 = vadd.s32 %v311, %v301
        %v313 = vadd.s32 %v312, %v303
        %v314 = vand.u32 %v291, 65535
        %v315 = vshrl.u32 %v291, 16
        %v316 = vand.u32 %v286, 65535
        %v317 = vshrl.u32 %v286, 16
        %v318 = vmul.u32 %v314, %v316
        %v319 = vmul.u32 %v314, %v317
        %v320 = vmul.u32 %v315, %v316
        %v321 = vmul.u32 %v315, %v317
        %v322 = vshll.u32 %v319, 16
        %v323 = vshrl.u32 %v319, 16
        %v324 = vshll.u32 %v320, 16
        %v325 = vshrl.u32 %v320, 16
        %vm326 = vc.u32 %v318, %v322
        %v327 = vsel %vm326, 1, 0
        %v328 = vadd.s32 %v318, %v322
        %v329 = vadd.s32 %v321, %v327
        %vm330 = vc.u32 %v328, %v324
        %v331 = vsel %vm330, 1, 0
        %v332 = vadd.s32 %v328, %v324
        %v333 = vadd.s32 %v329, %v331
        %v334 = vadd.s32 %v333, %v323
        %v335 = vadd.s32 %v334, %v325
        %v336 = vmul.u32 %v291, %v282
        %v337 = vadd.s32 %v313, %v332
        %vm338 = vc.u32 %v313, %v332
        %v339 = vadd.s32 %v335, 1
        %v340 = vsel %vm338, %v339, %v335
        %v341 = vadd.s32 %v336, %v340
        %v342 = vadd.s32 %v341, 536870912
        %v343 = vshrl.u32 %v342, 30
        %v344 = vshll.u32 %v343, 30
        %v345 = vsub.s32 %v341, %v344
        %vm346 = vcmp.lt.s32.totalorder %v345, 0
        %v347 = vsub.s32 0, %v345
        %v348 = vsel %vm346, %v347, %v345
        %v349 = vclz %v348
        %v350 = vsub.s32 %v349, 2
        %vm351 = vcmp.gt.s32.totalorder 0, %v350
        %v352 = vsel %vm351, 0, %v350
        %v353 = vsub.s32 32, %v352
        %v354 = vshll.u32 %v345, %v352
        %v355 = vshrl.u32 %v337, %v353
        %v356 = vor.u32 %v354, %v355
        %v357 = vsub.s32 4294967266, %v352
        %v358 = vadd.s32 %v357, 127
        %v359 = vshll.u32 %v358, 23
        %v360 = vor.u32 4788187, %v359
        %v361 = vand.u32 2147483647, %v360
        %v363 = vcvt.s32.f32 %v356
        %v364 = vmul.f32 %v363, %v361
        %v365 = vxor.u32 %v364, 2147483648
        %v366 = vsel %vm245, %v365, %v364
        %v367 = vsub.s32 4, %v343
        %v368 = vsel %vm245, %v367, %v343
        %v369 = vsel %vm244, %v242, %v366
        %v370 = vsel %vm244, 0, %v368
        %v371 = vmul.f32 %v369, %v369
        %v372 = vmul.f32 %v371, -0.001358992
        %v373 = vadd.f32 %v372, 0.041655596
        %v374 = vmul.f32 %v371, %v373
        %v375 = vadd.f32 %v374, -0.4999988
        %v376 = vmul.f32 %v371, %v375
        %v377 = vadd.f32 1.0, %v376
        %v378 = vmul.f32 %v369, %v369
        %v379 = vmul.f32 %v378, -0.00019511016
        %v380 = vadd.f32 %v379, 0.008332121
        %v381 = vmul.f32 %v378, %v380
        %v382 = vadd.f32 %v381, -0.16666654
        %v383 = vmul.f32 %v378, %v382
        %v384 = vadd.f32 %v383, 1.0
        %v385 = vmul.f32 %v384, %v369
        %vm386 = vweird.f32 %v242
        %v387 = vand.u32 %v370, 3
        %vm388 = vcmp.lt.s32.totalorder %v387, 2
        %vm389 = vcmp.eq.s32.totalorder %v387, 0
        %v390 = vxor.u32 %v385, 2147483648
        %v391 = vsel %vm389, %v377, %v390
        %vm392 = vcmp.eq.s32.totalorder %v387, 2
        %v393 = vxor.u32 %v377, 2147483648
        %v394 = vsel %vm392, %v393, %v385
        %v395 = vsel %vm388, %v391, %v394
        %v396 = vsel %vm386, nan, %v395
        %v397 = vmul.f32 %v396, 1.4142135
        %398 = vst [vmem:[%s211] sm:$0xff] %v397
        %s399 = sand.u32 %s119, 1
        %s400 = scalar_lea.sflag [#allocation3], %s399
        %s401 = sand.u32 %s119, 1
        %s402 = smul.addr %s401, 8
        %s403 = scalar_lea.vmem [#allocation2], %s402
        // Predicated region
        $region33: #{tpu_custom_call.1} parent=31 // pred_check
          %p404 = pneg %p129
        $region34: #{tpu_custom_call.1} parent=31 // pred_check_branch
          %406 = sbr.rel (%p404) target = $region36
        $region35: #{tpu_custom_call.1} parent=31 // pred_region
          %408 = vsyncadd %s400, 0
          %s409 = smul.addr %s21, 2
          %s410 = sadd.s32 %s22, %s409
          %s411 = smul.addr %s410, 8
          %s412 = scalar_lea.hbm %s3, %s411
          %s414 = sshll.u32 %s403, 4
          %s415 = int_to_ptr.vmem [resolvable:$true] %s414
          %s416 = sshll.u32 %s412, 4
          %s417 = int_to_ptr.hbm [resolvable:$true] %s416
          %419 = dma.vmem_to_hbm [thread:$0]  %s415, 128, %s417, %s400
        $region36: #{tpu_custom_call.1} parent=31 // pred_fallthru
          _
      $region32: #{tpu_custom_call.1} parent=5 // pred_fallthru
        _
      %p420 = scmp.le.s32.totalorder 2, %s12
      // Predicated region
      $region37: #{tpu_custom_call.1} parent=5 // pred_check
        %p421 = pneg %p420
      $region38: #{tpu_custom_call.1} parent=5 // pred_check_branch
        %423 = sbr.rel (%p421) target = $region40
      $region39: #{tpu_custom_call.1} parent=5 // pred_region
        %s424 = ssub.s32 %s12, 2
        // Predicated region
        $region41: #{tpu_custom_call.1} parent=39 // pred_check
          %p425 = pneg %p135
        $region42: #{tpu_custom_call.1} parent=39 // pred_check_branch
          %427 = sbr.rel (%p425) target = $region44
        $region43: #{tpu_custom_call.1} parent=39 // pred_region
          %s428 = sand.u32 %s120, 1
          %s429 = scalar_lea.sflag [#allocation3], %s428
          %s430 = sand.u32 %s120, 1
          %s431 = smul.addr %s430, 8
          %s432 = scalar_lea.vmem [#allocation2], %s431
          %434 = dma.done %s429, 128
        $region44: #{tpu_custom_call.1} parent=39 // pred_fallthru
          _
      $region40: #{tpu_custom_call.1} parent=5 // pred_fallthru
        _
    $region6: #{tpu_custom_call.1} parent=1 // loop_footer
      %s16 = sadd.s32 1, %s12
    $region7: #{tpu_custom_call.1} parent=1 // loop_footer_branch
      %11 = sbr.rel target = $region3
    $region8: #{tpu_custom_call.1} parent=1 // loop_exit
      _
    %435 = vsyncpa [#allocation3], 1
    %s436 = scalar_lea.sflag [#allocation3], 1
    %437 = vsyncpa %s436, 1

</llo_original>
